<compile_context>
chip_gen: v7x
topology: tpu7x:2x2x1
jax: 0.10.0
libtpu: 0.0.40
codegen_flags: <defaults>
</compile_context>

<pallas_src>
import functools

import jax
import jax.numpy as jnp
from jax.experimental import pallas as pl
from jax.experimental.pallas import tpu as pltpu

EPS = 1e-5


def _fold_bn(s, q, g, be, inv_b):
    """Training-mode BatchNorm folded to y = h*scale + shift from one-pass stats."""
    # TODO(synk): one-pass var = E[h^2] - mean^2 can cancel for ill-conditioned
    #             activations; switch to a shifted/Welford accumulation if needed.
    mean = s * inv_b
    var = jnp.maximum(q * inv_b - mean * mean, 0.0)
    scale = g * jax.lax.rsqrt(var + EPS)
    shift = be - mean * scale
    return scale, shift


# -----------------------------------------------------------------------------
# Tiled 3-phase kernel (batch spans several tiles):
#   phase 0: stream x tiles, fc1 on the MXU, accumulate bn1 stats, stash x (bf16)
#   phase 1: bn1(FMA)+relu, fc2 on the MXU, accumulate bn2 stats (h2 reuses h1 scratch)
#   phase 2: bn2(FMA) + residual + relu, stream output tiles
# -----------------------------------------------------------------------------
def _tiled_kernel(x_ref, w1_ref, w2_ref, g1_ref, be1_ref, g2_ref, be2_ref,
                  o_ref, h_ref, xs_ref, s1_ref, q1_ref, s2_ref, q2_ref,
                  *, inv_b, b_true, needs_mask):
    p = pl.program_id(0)                 # phase
    i = pl.program_id(1)                 # batch-tile index
    tm = x_ref.shape[0]
    row0 = pl.multiple_of(i * tm, tm)
    rows = pl.ds(row0, tm)

    def colsum8(h):
        # Partial column sums kept at 8 sublanes (pure VPU adds per tile); the
        # single 8->1 cross-sublane (XLU) reduce happens once per phase (finalize).
        return jnp.sum(h.reshape(tm // 8, 8, h.shape[-1]), axis=0)

    def finalize(s_ref, q_ref, g_ref, be_ref):
        scale, shift = _fold_bn(jnp.sum(s_ref[...], axis=0, keepdims=True),
                                jnp.sum(q_ref[...], axis=0, keepdims=True),
                                g_ref[...], be_ref[...], inv_b)
        s_ref[0:1, :] = scale            # stats scratch is reused to hold the folded
        q_ref[0:1, :] = shift            # coefficients (computed once per phase)

    # ---------------- phase 0: fc1 (bf16 MXU) + one-pass bn1 stats ----------------
    @pl.when(p == 0)
    def _():
        @pl.when(i == 0)
        def _():
            s1_ref[...] = jnp.zeros_like(s1_ref)
            q1_ref[...] = jnp.zeros_like(q1_ref)
            s2_ref[...] = jnp.zeros_like(s2_ref)
            q2_ref[...] = jnp.zeros_like(q2_ref)

        xb = x_ref[...].astype(jnp.bfloat16)
        xs_ref[rows, :] = xb                       # residual stash: x read from HBM once
        h1 = jnp.dot(xb, w1_ref[...], preferred_element_type=jnp.float32)
        h_ref[rows, :] = h1
        s1_ref[...] += colsum8(h1)
        q1_ref[...] += colsum8(h1 * h1)

    # --------- phase 1: bn1 (FMA) + relu + fc2 (bf16 MXU) + one-pass bn2 stats ----
    @pl.when(p == 1)
    def _():
        @pl.when(i == 0)
        def _():
            finalize(s1_ref, q1_ref, g1_ref, be1_ref)

        a1 = jnp.maximum(h_ref[rows, :] * s1_ref[0:1, :] + q1_ref[0:1, :], 0.0)
        if needs_mask:
            rid = row0 + jax.lax.broadcasted_iota(jnp.int32, (tm, 1), 0)
            a1 = jnp.where(rid < b_true, a1, 0.0)  # padded rows contribute 0 to bn2 stats
        h2 = jnp.dot(a1.astype(jnp.bfloat16), w2_ref[...],
                     preferred_element_type=jnp.float32)
        h_ref[rows, :] = h2                        # reuse the fc1 scratch for fc2
        s2_ref[...] += colsum8(h2)
        q2_ref[...] += colsum8(h2 * h2)

    # ---------------- phase 2: bn2 (FMA) + residual add + relu + store ------------
    @pl.when(p == 2)
    def _():
        @pl.when(i == 0)
        def _():
            finalize(s2_ref, q2_ref, g2_ref, be2_ref)

        out = (h_ref[rows, :] * s2_ref[0:1, :] + q2_ref[0:1, :]
               + xs_ref[rows, :].astype(jnp.float32))
        o_ref[...] = jnp.maximum(out, 0.0).astype(o_ref.dtype)


# -----------------------------------------------------------------------------
# Single-tile fused kernel: whole batch in one grid step (no phase axis, no
# parked blocks, residual read straight from the f32 x block).
# -----------------------------------------------------------------------------
def _fused_kernel(x_ref, w1_ref, w2_ref, g1_ref, be1_ref, g2_ref, be2_ref, o_ref,
                  *, inv_b, b_true, needs_mask):
    x = x_ref[...]
    h1 = jnp.dot(x.astype(jnp.bfloat16), w1_ref[...],
                 preferred_element_type=jnp.float32)
    scale1, shift1 = _fold_bn(jnp.sum(h1, axis=0, keepdims=True),
                              jnp.sum(h1 * h1, axis=0, keepdims=True),
                              g1_ref[...], be1_ref[...], inv_b)
    a1 = jnp.maximum(h1 * scale1 + shift1, 0.0)
    if needs_mask:
        rid = jax.lax.broadcasted_iota(jnp.int32, (x.shape[0], 1), 0)
        a1 = jnp.where(rid < b_true, a1, 0.0)      # padded rows out of bn2 stats
    h2 = jnp.dot(a1.astype(jnp.bfloat16), w2_ref[...],
                 preferred_element_type=jnp.float32)
    scale2, shift2 = _fold_bn(jnp.sum(h2, axis=0, keepdims=True),
                              jnp.sum(h2 * h2, axis=0, keepdims=True),
                              g2_ref[...], be2_ref[...], inv_b)
    o_ref[...] = jnp.maximum(h2 * scale2 + shift2 + x, 0.0).astype(o_ref.dtype)


def _vmem_cap_bytes():
    """~85% of this generation's physical VMEM (conservative v7x-sized fallback)."""
    try:
        return int(0.85 * pltpu.get_tpu_info().vmem_capacity_bytes)
    except Exception:
        return int(0.85 * (64 << 20))


def residual_block(x, w1, g1, be1, w2, g2, be2, *, tm_max=512):
    """Fused ResidualBlock forward (training-mode BatchNorm semantics).

    x: (B, F) f32. w1/w2 pre-transposed to (in, out). g*/be*: (F,) BN affine params.
    Linear biases are intentionally NOT inputs: they cancel exactly under
    training-mode BatchNorm (h - mean(h) is invariant to per-column constants).
    """
    B, F_in = x.shape
    F_out = w1.shape[1]
    assert F_in == F_out, "residual add requires in_features == out_features"
    assert w1.shape == (F_in, F_out) and w2.shape == (F_out, F_out)
    assert B >= 2, "training-mode BatchNorm needs batch >= 2"
    F = F_out

    # Lane-dense feature dim; padded columns are harmless (gamma padded with 0)
    # and sliced off at the end.
    F_pad = max(128, ((F + 127) // 128) * 128)

    # Batch tiling: keep TM large regardless of B (no divisor cliff); pad the batch
    # up to a multiple of TM and mask padded rows out of the BN statistics.
    B8 = ((B + 7) // 8) * 8
    TM = max(8, (min(tm_max, B8) // 8) * 8)
    B_pad = ((B8 + TM - 1) // TM) * TM
    nt = B_pad // TM
    needs_mask = B_pad > B
    inv_b = 1.0 / B

    def pad2(a, r, c):
        return jnp.pad(a, ((0, r - a.shape[0]), (0, c - a.shape[1])))

    xp = pad2(x.astype(jnp.float32), B_pad, F_pad)
    w1p = pad2(w1.astype(jnp.float32), F_pad, F_pad).astype(jnp.bfloat16)
    w2p = pad2(w2.astype(jnp.float32), F_pad, F_pad).astype(jnp.bfloat16)
    g1p = pad2(g1.reshape(1, F).astype(jnp.float32), 1, F_pad)
    be1p = pad2(be1.reshape(1, F).astype(jnp.float32), 1, F_pad)
    g2p = pad2(g2.reshape(1, F).astype(jnp.float32), 1, F_pad)
    be2p = pad2(be2.reshape(1, F).astype(jnp.float32), 1, F_pad)
    args = (xp, w1p, w2p, g1p, be1p, g2p, be2p)

    cap = _vmem_cap_bytes()
    est_fused = (2 * B_pad * F_pad * 4        # x in + out blocks
                 + 2 * F_pad * F_pad * 2      # w1 + w2 (bf16)
                 + 4 * 8 * F_pad * 4          # BN params (sublane-padded)
                 + 4 * B_pad * F_pad * 4)     # live f32 intermediates
    est_tiled = (2 * TM * F_pad * 4           # x tiles (double-buffered, phase 0)
                 + 2 * TM * F_pad * 4         # out tiles (double-buffered, phase 2)
                 + 2 * F_pad * F_pad * 2      # w1 + w2 (bf16, single-buffered)
                 + 4 * 8 * F_pad * 4          # BN params
                 + B_pad * F_pad * 4          # shared h scratch (h1 then h2)
                 + B_pad * F_pad * 2          # bf16 residual stash of x
                 + 4 * 8 * F_pad * 4)         # stats / folded-coefficient scratch
    need_fused = int(1.4 * est_fused) + (2 << 20)
    need_tiled = int(1.4 * est_tiled) + (2 << 20)

    out_shape = jax.ShapeDtypeStruct((B_pad, F_pad), jnp.float32)

    if nt == 1 and need_fused <= cap:
        # ------------- single-tile fast path: one grid step, no phase axis -------
        kern = functools.partial(_fused_kernel, inv_b=inv_b, b_true=B,
                                 needs_mask=needs_mask)
        full = lambda s: pl.BlockSpec(s, lambda i: (0, 0))
        out = pl.pallas_call(
            kern, out_shape=out_shape, grid=(1,),
            in_specs=[full((B_pad, F_pad)), full((F_pad, F_pad)), full((F_pad, F_pad)),
                      full((1, F_pad)), full((1, F_pad)), full((1, F_pad)),
                      full((1, F_pad))],
            out_specs=full((B_pad, F_pad)),
            compiler_params=pltpu.CompilerParams(
                dimension_semantics=("arbitrary",),
                vmem_limit_bytes=int(min(cap, max(need_fused, min(32 << 20, cap))))),
        )(*args)
        return out[:B, :F]

    if need_tiled > cap:
        # TODO(synk): HBM-spill 3-pass streaming variant for (B, F) intermediates
        #             that do not fit VMEM (esp. v7x's 64 MiB).
        raise NotImplementedError(
            f"intermediates need ~{need_tiled} B VMEM; budget is {cap} B")

    kern = functools.partial(_tiled_kernel, inv_b=inv_b, b_true=B,
                             needs_mask=needs_mask)
    vmem_limit = int(min(cap, max(need_tiled, min(32 << 20, cap))))

    def _run(single_buffer):
        if single_buffer:
            # Constant index_map -> fetched once; single-buffer halves their VMEM.
            cspec = lambda s: pl.BlockSpec(s, lambda p, i: (0, 0),
                                           pipeline_mode=pl.Buffered(1))
        else:
            cspec = lambda s: pl.BlockSpec(s, lambda p, i: (0, 0))
        # x is consumed only in phase 0 (parked afterwards -> no refetch);
        # the output is produced only in phase 2 (parked on block 0 before that).
        x_spec = pl.BlockSpec((TM, F_pad),
                              lambda p, i: (jnp.where(p == 0, i, nt - 1), 0))
        o_spec = pl.BlockSpec((TM, F_pad),
                              lambda p, i: (jnp.where(p == 2, i, 0), 0))
        return pl.pallas_call(
            kern, out_shape=out_shape, grid=(3, nt),
            in_specs=[x_spec, cspec((F_pad, F_pad)), cspec((F_pad, F_pad)),
                      cspec((1, F_pad)), cspec((1, F_pad)),
                      cspec((1, F_pad)), cspec((1, F_pad))],
            out_specs=o_spec,
            scratch_shapes=[
                pltpu.VMEM((B_pad, F_pad), jnp.float32),   # h: fc1 out, reused for fc2
                pltpu.VMEM((B_pad, F_pad), jnp.bfloat16),  # bf16 stash of x (residual)
                pltpu.VMEM((8, F_pad), jnp.float32),       # bn1 sum   -> scale1
                pltpu.VMEM((8, F_pad), jnp.float32),       # bn1 sumsq -> shift1
                pltpu.VMEM((8, F_pad), jnp.float32),       # bn2 sum   -> scale2
                pltpu.VMEM((8, F_pad), jnp.float32),       # bn2 sumsq -> shift2
            ],
            # TODO(synk): on v7x, shard the batch-tile axis across both TensorCores
            #             and reduce partial stats via VMEM_SHARED/CMEM + core_barrier.
            compiler_params=pltpu.CompilerParams(
                dimension_semantics=("arbitrary", "arbitrary"),
                vmem_limit_bytes=vmem_limit),
        )(*args)

    try:
        out = _run(True)
    except Exception:   # older jax without BlockSpec pipeline_mode / pl.Buffered
        out = _run(False)

    # TODO(synk): when F != F_pad, returning the padded (B_pad, F_pad) array and
    #             slicing lazily at the consumer avoids an extra HBM round-trip.
    return out[:B, :F]


# ----------------------------- references ------------------------------------
def _bn_train(h, g, be):
    m = jnp.mean(h, axis=0, keepdims=True)
    v = jnp.mean((h - m) ** 2, axis=0, keepdims=True)
    return g * (h - m) / jnp.sqrt(v + EPS) + be


def reference_f32(x, w1, b1, g1, be1, w2, b2, g2, be2):
    """Full-precision reference WITH linear biases (they cancel under training BN)."""
    h = jax.nn.relu(_bn_train(x @ w1 + b1, g1, be1))
    h = _bn_train(h @ w2 + b2, g2, be2)
    return jax.nn.relu(h + x)


def reference_bf16_mxu(x, w1, g1, be1, w2, g2, be2, *, residual_bf16):
    """Same quantization as the kernel: bf16 matmul operands, f32 accumulation,
    no biases; the tiled kernel additionally stashes the residual in bf16."""
    def mm(a, w):
        return jnp.dot(a.astype(jnp.bfloat16), w.astype(jnp.bfloat16),
                       preferred_element_type=jnp.float32)
    h = jax.nn.relu(_bn_train(mm(x, w1), g1, be1))
    h = _bn_train(mm(h, w2), g2, be2)
    res = x.astype(jnp.bfloat16).astype(jnp.float32) if residual_bf16 else x
    return jax.nn.relu(h + res)


if __name__ == "__main__":
    B, F_IN, F_OUT = 64, 96, 96    # residual add requires F_IN == F_OUT; F pads to 128

    key = jax.random.PRNGKey(0)
    kx, kw1, kb1, kw2, kb2 = jax.random.split(key, 5)
    x = jax.random.normal(kx, (B, F_IN), dtype=jnp.float32)

    # PyTorch nn.Linear init: U(-1/sqrt(fan_in), 1/sqrt(fan_in)); torch stores
    # weights as (out, in) - built here already transposed to (in, out).
    lim1 = 1.0 / (F_IN ** 0.5)
    w1 = jax.random.uniform(kw1, (F_IN, F_OUT), jnp.float32, -lim1, lim1)
    b1 = jax.random.uniform(kb1, (F_OUT,), jnp.float32, -lim1, lim1)
    lim2 = 1.0 / (F_OUT ** 0.5)
    w2 = jax.random.uniform(kw2, (F_OUT, F_OUT), jnp.float32, -lim2, lim2)
    b2 = jax.random.uniform(kb2, (F_OUT,), jnp.float32, -lim2, lim2)

    # BatchNorm1d defaults: gamma = 1, beta = 0.
    g1 = jnp.ones((F_OUT,), jnp.float32)
    be1 = jnp.zeros((F_OUT,), jnp.float32)
    g2 = jnp.ones((F_OUT,), jnp.float32)
    be2 = jnp.zeros((F_OUT,), jnp.float32)

    ref = reference_f32(x, w1, b1, g1, be1, w2, b2, g2, be2)

    # 1) single-tile fused fast path (nt == 1).
    out1 = jax.block_until_ready(residual_block(x, w1, g1, be1, w2, g2, be2))
    assert out1.shape == (B, F_OUT)
    assert jnp.allclose(out1, reference_bf16_mxu(x, w1, g1, be1, w2, g2, be2,
                                                 residual_bf16=False),
                        atol=1e-2, rtol=1e-2), "fused path: mismatch vs bf16 reference"
    assert jnp.allclose(out1, ref, atol=5e-2, rtol=5e-2), "fused path: mismatch vs f32"

    # 2) 3-phase tiled path (tm_max=32 -> TM=32, 2 batch tiles).
    out2 = jax.block_until_ready(residual_block(x, w1, g1, be1, w2, g2, be2,
                                                tm_max=32))
    assert jnp.allclose(out2, reference_bf16_mxu(x, w1, g1, be1, w2, g2, be2,
                                                 residual_bf16=True),
                        atol=1e-2, rtol=1e-2), "tiled path: mismatch vs bf16 reference"
    assert jnp.allclose(out2, ref, atol=5e-2, rtol=5e-2), "tiled path: mismatch vs f32"

    # 3) ragged batch (B=52, not a multiple of 8): padded rows are masked out of
    #    the BN statistics; TM stays at 16 (no tile-size cliff).
    Br = 52
    xr = x[:Br]
    out3 = jax.block_until_ready(residual_block(xr, w1, g1, be1, w2, g2, be2,
                                                tm_max=16))
    ref3 = reference_f32(xr, w1, b1, g1, be1, w2, b2, g2, be2)
    assert out3.shape == (Br, F_OUT)
    assert jnp.allclose(out3, reference_bf16_mxu(xr, w1, g1, be1, w2, g2, be2,
                                                 residual_bf16=True),
                        atol=1e-2, rtol=1e-2), "ragged path: mismatch vs bf16 reference"
    assert jnp.allclose(out3, ref3, atol=5e-2, rtol=5e-2), "ragged path: mismatch vs f32"

    print("KERNEL_OK")
</pallas_src>

<mosaic_0001>
module attributes {stable_mosaic.version = 11 : i64} {
  func.func @_fused_kernel(%arg0: i32, %arg1: memref<64x128xf32, #tpu.memory_space<vmem>>, %arg2: memref<128x128xbf16, #tpu.memory_space<vmem>>, %arg3: memref<128x128xbf16, #tpu.memory_space<vmem>>, %arg4: memref<1x128xf32, #tpu.memory_space<vmem>>, %arg5: memref<1x128xf32, #tpu.memory_space<vmem>>, %arg6: memref<1x128xf32, #tpu.memory_space<vmem>>, %arg7: memref<1x128xf32, #tpu.memory_space<vmem>>, %arg8: memref<64x128xf32, #tpu.memory_space<vmem>>) attributes {dimension_semantics = [#tpu.dimension_semantics<arbitrary>], iteration_bounds = array<i64: 1>, scalar_prefetch = 0 : i64, scratch_operands = 0 : i64, tpu.core_type = #tpu.core_type<tc>, window_params = [{pipeline_mode = #tpu.pipeline_mode<synchronous>, transform_indices = @transform_0, window_bounds = array<i64: 64, 128>}, {pipeline_mode = #tpu.pipeline_mode<synchronous>, transform_indices = @transform_1, window_bounds = array<i64: 128, 128>}, {pipeline_mode = #tpu.pipeline_mode<synchronous>, transform_indices = @transform_2, window_bounds = array<i64: 128, 128>}, {pipeline_mode = #tpu.pipeline_mode<synchronous>, transform_indices = @transform_3, window_bounds = array<i64: 1, 128>}, {pipeline_mode = #tpu.pipeline_mode<synchronous>, transform_indices = @transform_4, window_bounds = array<i64: 1, 128>}, {pipeline_mode = #tpu.pipeline_mode<synchronous>, transform_indices = @transform_5, window_bounds = array<i64: 1, 128>}, {pipeline_mode = #tpu.pipeline_mode<synchronous>, transform_indices = @transform_6, window_bounds = array<i64: 1, 128>}, {pipeline_mode = #tpu.pipeline_mode<synchronous>, transform_indices = @transform_7, window_bounds = array<i64: 64, 128>}]} {
    %c0 = arith.constant 0 : index
    %c0_0 = arith.constant 0 : index
    %0 = vector.load %arg1[%c0, %c0_0] : memref<64x128xf32, #tpu.memory_space<vmem>>, vector<64x128xf32>
    %1 = arith.truncf %0 : vector<64x128xf32> to vector<64x128xbf16>
    %c0_1 = arith.constant 0 : index
    %c0_2 = arith.constant 0 : index
    %2 = vector.load %arg2[%c0_1, %c0_2] : memref<128x128xbf16, #tpu.memory_space<vmem>>, vector<128x128xbf16>
    %cst = arith.constant dense<0.000000e+00> : vector<64x128xf32>
    %3 = tpu.matmul %1, %2, %cst {dimension_numbers = #tpu.dot_dimension_numbers<[1], [0], [0], [1], [0, 0, 1, 1], [], []>} : vector<64x128xbf16>, vector<128x128xbf16>, vector<64x128xf32> -> vector<64x128xf32>
    %cst_3 = arith.constant dense<0.000000e+00> : vector<128xf32>
    %4 = vector.multi_reduction <add>, %3, %cst_3 [0] : vector<64x128xf32> to vector<128xf32>
    %5 = vector.shape_cast %4 : vector<128xf32> to vector<1x128xf32>
    %6 = arith.mulf %3, %3 : vector<64x128xf32>
    %cst_4 = arith.constant dense<0.000000e+00> : vector<128xf32>
    %7 = vector.multi_reduction <add>, %6, %cst_4 [0] : vector<64x128xf32> to vector<128xf32>
    %8 = vector.shape_cast %7 : vector<128xf32> to vector<1x128xf32>
    %c0_5 = arith.constant 0 : index
    %c0_6 = arith.constant 0 : index
    %9 = vector.load %arg4[%c0_5, %c0_6] : memref<1x128xf32, #tpu.memory_space<vmem>>, vector<1x128xf32>
    %c0_7 = arith.constant 0 : index
    %c0_8 = arith.constant 0 : index
    %10 = vector.load %arg5[%c0_7, %c0_8] : memref<1x128xf32, #tpu.memory_space<vmem>>, vector<1x128xf32>
    %cst_9 = arith.constant 1.562500e-02 : f32
    %11 = vector.broadcast %cst_9 : f32 to vector<1x128xf32>
    %12 = arith.mulf %5, %11 : vector<1x128xf32>
    %cst_10 = arith.constant 1.562500e-02 : f32
    %13 = vector.broadcast %cst_10 : f32 to vector<1x128xf32>
    %14 = arith.mulf %8, %13 : vector<1x128xf32>
    %15 = arith.mulf %12, %12 : vector<1x128xf32>
    %16 = arith.subf %14, %15 : vector<1x128xf32>
    %cst_11 = arith.constant 0.000000e+00 : f32
    %17 = vector.broadcast %cst_11 : f32 to vector<1x128xf32>
    %18 = arith.maximumf %16, %17 : vector<1x128xf32>
    %cst_12 = arith.constant 9.99999974E-6 : f32
    %19 = vector.broadcast %cst_12 : f32 to vector<1x128xf32>
    %20 = arith.addf %18, %19 : vector<1x128xf32>
    %21 = math.rsqrt %20 : vector<1x128xf32>
    %22 = arith.mulf %9, %21 : vector<1x128xf32>
    %23 = arith.mulf %12, %22 : vector<1x128xf32>
    %24 = arith.subf %10, %23 : vector<1x128xf32>
    %25 = vector.broadcast %22 : vector<1x128xf32> to vector<64x128xf32>
    %26 = arith.mulf %3, %25 : vector<64x128xf32>
    %27 = vector.broadcast %24 : vector<1x128xf32> to vector<64x128xf32>
    %28 = arith.addf %26, %27 : vector<64x128xf32>
    %cst_13 = arith.constant 0.000000e+00 : f32
    %29 = vector.broadcast %cst_13 : f32 to vector<64x128xf32>
    %30 = arith.maximumf %28, %29 : vector<64x128xf32>
    %31 = arith.truncf %30 : vector<64x128xf32> to vector<64x128xbf16>
    %c0_14 = arith.constant 0 : index
    %c0_15 = arith.constant 0 : index
    %32 = vector.load %arg3[%c0_14, %c0_15] : memref<128x128xbf16, #tpu.memory_space<vmem>>, vector<128x128xbf16>
    %cst_16 = arith.constant dense<0.000000e+00> : vector<64x128xf32>
    %33 = tpu.matmul %31, %32, %cst_16 {dimension_numbers = #tpu.dot_dimension_numbers<[1], [0], [0], [1], [0, 0, 1, 1], [], []>} : vector<64x128xbf16>, vector<128x128xbf16>, vector<64x128xf32> -> vector<64x128xf32>
    %cst_17 = arith.constant dense<0.000000e+00> : vector<128xf32>
    %34 = vector.multi_reduction <add>, %33, %cst_17 [0] : vector<64x128xf32> to vector<128xf32>
    %35 = vector.shape_cast %34 : vector<128xf32> to vector<1x128xf32>
    %36 = arith.mulf %33, %33 : vector<64x128xf32>
    %cst_18 = arith.constant dense<0.000000e+00> : vector<128xf32>
    %37 = vector.multi_reduction <add>, %36, %cst_18 [0] : vector<64x128xf32> to vector<128xf32>
    %38 = vector.shape_cast %37 : vector<128xf32> to vector<1x128xf32>
    %c0_19 = arith.constant 0 : index
    %c0_20 = arith.constant 0 : index
    %39 = vector.load %arg6[%c0_19, %c0_20] : memref<1x128xf32, #tpu.memory_space<vmem>>, vector<1x128xf32>
    %c0_21 = arith.constant 0 : index
    %c0_22 = arith.constant 0 : index
    %40 = vector.load %arg7[%c0_21, %c0_22] : memref<1x128xf32, #tpu.memory_space<vmem>>, vector<1x128xf32>
    %cst_23 = arith.constant 1.562500e-02 : f32
    %41 = vector.broadcast %cst_23 : f32 to vector<1x128xf32>
    %42 = arith.mulf %35, %41 : vector<1x128xf32>
    %cst_24 = arith.constant 1.562500e-02 : f32
    %43 = vector.broadcast %cst_24 : f32 to vector<1x128xf32>
    %44 = arith.mulf %38, %43 : vector<1x128xf32>
    %45 = arith.mulf %42, %42 : vector<1x128xf32>
    %46 = arith.subf %44, %45 : vector<1x128xf32>
    %cst_25 = arith.constant 0.000000e+00 : f32
    %47 = vector.broadcast %cst_25 : f32 to vector<1x128xf32>
    %48 = arith.maximumf %46, %47 : vector<1x128xf32>
    %cst_26 = arith.constant 9.99999974E-6 : f32
    %49 = vector.broadcast %cst_26 : f32 to vector<1x128xf32>
    %50 = arith.addf %48, %49 : vector<1x128xf32>
    %51 = math.rsqrt %50 : vector<1x128xf32>
    %52 = arith.mulf %39, %51 : vector<1x128xf32>
    %53 = arith.mulf %42, %52 : vector<1x128xf32>
    %54 = arith.subf %40, %53 : vector<1x128xf32>
    %55 = vector.broadcast %52 : vector<1x128xf32> to vector<64x128xf32>
    %56 = arith.mulf %33, %55 : vector<64x128xf32>
    %57 = vector.broadcast %54 : vector<1x128xf32> to vector<64x128xf32>
    %58 = arith.addf %56, %57 : vector<64x128xf32>
    %59 = arith.addf %58, %0 : vector<64x128xf32>
    %cst_27 = arith.constant 0.000000e+00 : f32
    %60 = vector.broadcast %cst_27 : f32 to vector<64x128xf32>
    %61 = arith.maximumf %59, %60 : vector<64x128xf32>
    %c0_28 = arith.constant 0 : index
    %c0_29 = arith.constant 0 : index
    %62 = vector.load %arg8[%c0_28, %c0_29] : memref<64x128xf32, #tpu.memory_space<vmem>>, vector<64x128xf32>
    tpu.vector_store %arg8[%c0_28, %c0_29], %61 {strides = array<i32>} : memref<64x128xf32, #tpu.memory_space<vmem>>, vector<64x128xf32>,
    return
  }
  func.func @transform_0(%arg0: i32) -> (i32, i32) {
    %c0_i32 = arith.constant 0 : i32
    %c0_i32_0 = arith.constant 0 : i32
    %c0_i32_1 = arith.constant 0 : i32
    return %c0_i32, %c0_i32_0 : i32, i32
  }
  func.func @transform_1(%arg0: i32) -> (i32, i32) {
    %c0_i32 = arith.constant 0 : i32
    %c0_i32_0 = arith.constant 0 : i32
    %c0_i32_1 = arith.constant 0 : i32
    return %c0_i32, %c0_i32_0 : i32, i32
  }
  func.func @transform_2(%arg0: i32) -> (i32, i32) {
    %c0_i32 = arith.constant 0 : i32
    %c0_i32_0 = arith.constant 0 : i32
    %c0_i32_1 = arith.constant 0 : i32
    return %c0_i32, %c0_i32_0 : i32, i32
  }
  func.func @transform_3(%arg0: i32) -> (i32, i32) {
    %c0_i32 = arith.constant 0 : i32
    %c0_i32_0 = arith.constant 0 : i32
    %c0_i32_1 = arith.constant 0 : i32
    return %c0_i32, %c0_i32_0 : i32, i32
  }
  func.func @transform_4(%arg0: i32) -> (i32, i32) {
    %c0_i32 = arith.constant 0 : i32
    %c0_i32_0 = arith.constant 0 : i32
    %c0_i32_1 = arith.constant 0 : i32
    return %c0_i32, %c0_i32_0 : i32, i32
  }
  func.func @transform_5(%arg0: i32) -> (i32, i32) {
    %c0_i32 = arith.constant 0 : i32
    %c0_i32_0 = arith.constant 0 : i32
    %c0_i32_1 = arith.constant 0 : i32
    return %c0_i32, %c0_i32_0 : i32, i32
  }
  func.func @transform_6(%arg0: i32) -> (i32, i32) {
    %c0_i32 = arith.constant 0 : i32
    %c0_i32_0 = arith.constant 0 : i32
    %c0_i32_1 = arith.constant 0 : i32
    return %c0_i32, %c0_i32_0 : i32, i32
  }
  func.func @transform_7(%arg0: i32) -> (i32, i32) {
    %c0_i32 = arith.constant 0 : i32
    %c0_i32_0 = arith.constant 0 : i32
    %c0_i32_1 = arith.constant 0 : i32
    return %c0_i32, %c0_i32_0 : i32, i32
  }
}

</mosaic_0001>

<llo_original>
// kernel: tpu_custom_call.1
$region0: #{tpu_custom_call.1}
  #allocation0 [shape = 'u32[]', space=smem, size = 0x4, offset = 0x4, fixed_abs, tag = 'smem constant byte address 0x4 - core index']
  #allocation1 [shape = 'u32[144,128]{1,0:T(1,128)}', space=vmem, size = 0x12000, scoped, tag = 'internal scratch']
  %s0 = inlined_call_operand.hbm [shape: f32[64,128], index: 0, kind: input, shape index: {}]
  %s1 = inlined_call_operand.hbm [shape: bf16[128,128], index: 1, kind: input, shape index: {}]
  %s2 = inlined_call_operand.hbm [shape: bf16[128,128], index: 2, kind: input, shape index: {}]
  %s3 = inlined_call_operand.vmem [shape: f32[1,128], index: 3, kind: input, shape index: {}]
  %s4 = inlined_call_operand.vmem [shape: f32[1,128], index: 4, kind: input, shape index: {}]
  %s5 = inlined_call_operand.vmem [shape: f32[1,128], index: 5, kind: input, shape index: {}]
  %s6 = inlined_call_operand.vmem [shape: f32[1,128], index: 6, kind: input, shape index: {}]
  %s7 = inlined_call_operand.hbm [shape: f32[64,128], index: 7, kind: output, shape index: {}]
  %s8 = sld [smem:[#allocation0]]
  $region50: #{tpu_custom_call.1} parent=0
    _
  %s10 = ssub.s32 1, %s8
  %s11 = scalar_select 0, %s10, %s8
  $region1: #{tpu_custom_call.1} parent=0
    #allocation2 [shape = 'u8[32768]{0}', space=vmem, size = 0x8000, scoped, tag = 'input window, operand 0, single buffered']
    #allocation3 [shape = 's32[1]{0}', space=sflag, size = 0x4, scoped, tag = 'scoped memory for tpu_custom_call.1']
    #allocation4 [shape = 's32[1]{0}', space=sflag, size = 0x4, scoped, tag = 'scoped memory for tpu_custom_call.1']
    #allocation5 [shape = 'u8[32768]{0}', space=vmem, size = 0x8000, scoped, tag = 'input window, operand 1, single buffered']
    #allocation6 [shape = 's32[1]{0}', space=sflag, size = 0x4, scoped, tag = 'scoped memory for tpu_custom_call.1']
    #allocation7 [shape = 'u8[32768]{0}', space=vmem, size = 0x8000, scoped, tag = 'input window, operand 2, single buffered']
    #allocation8 [shape = 'u8[32768]{0}', space=vmem, size = 0x8000, scoped, tag = 'output window, operand 0, single buffered']
    %12 = vsyncpa [#allocation3], 0
    %13 = vsyncpa [#allocation6], 0
    %14 = vsyncpa [#allocation4], 0
    // Predicated region
    $region2: #{tpu_custom_call.1} parent=1 // pred_check
      _
    $region3: #{tpu_custom_call.1} parent=1 // pred_check_branch
      %16 = sbr.rel (0) target = $region5
    $region4: #{tpu_custom_call.1} parent=1 // pred_region
      %s18 = ssub.s32 1024, 1024
      %19 = vsyncadd [#allocation3], %s18
      %s20 = sshll.u32 [#allocation2], 4
      %s21 = int_to_ptr.vmem [resolvable:$true] %s20
      %26 = dma.hbm_to_vmem [thread:$0]  %s0, 1024, %s21, [#allocation3], 128, 128, 8
    $region5: #{tpu_custom_call.1} parent=1 // pred_fallthru
      _
    // Predicated region
    $region6: #{tpu_custom_call.1} parent=1 // pred_check
      _
    $region7: #{tpu_custom_call.1} parent=1 // pred_check_branch
      %28 = sbr.rel (0) target = $region9
    $region8: #{tpu_custom_call.1} parent=1 // pred_region
      %s30 = ssub.s32 1024, 1024
      %31 = vsyncadd [#allocation6], %s30
      %s32 = sshll.u32 [#allocation5], 4
      %s33 = int_to_ptr.vmem [resolvable:$true] %s32
      %38 = dma.hbm_to_vmem [thread:$0]  %s1, 1024, %s33, [#allocation6], 64, 64, 4
    $region9: #{tpu_custom_call.1} parent=1 // pred_fallthru
      _
    // Predicated region
    $region10: #{tpu_custom_call.1} parent=1 // pred_check
      _
    $region11: #{tpu_custom_call.1} parent=1 // pred_check_branch
      %40 = sbr.rel (0) target = $region13
    $region12: #{tpu_custom_call.1} parent=1 // pred_region
      %s42 = ssub.s32 1024, 1024
      %43 = vsyncadd [#allocation6], %s42
      %s44 = sshll.u32 [#allocation7], 4
      %s45 = int_to_ptr.vmem [resolvable:$true] %s44
      %50 = dma.hbm_to_vmem [thread:$0]  %s2, 1024, %s45, [#allocation6], 64, 64, 4
    $region13: #{tpu_custom_call.1} parent=1 // pred_fallthru
      _
    // Predicated region
    $region14: #{tpu_custom_call.1} parent=1 // pred_check
      _
    $region15: #{tpu_custom_call.1} parent=1 // pred_check_branch
      %52 = sbr.rel (0) target = $region17
    $region16: #{tpu_custom_call.1} parent=1 // pred_region
      _
    $region17: #{tpu_custom_call.1} parent=1 // pred_fallthru
      _
    // Predicated region
    $region18: #{tpu_custom_call.1} parent=1 // pred_check
      _
    $region19: #{tpu_custom_call.1} parent=1 // pred_check_branch
      %54 = sbr.rel (0) target = $region21
    $region20: #{tpu_custom_call.1} parent=1 // pred_region
      _
    $region21: #{tpu_custom_call.1} parent=1 // pred_fallthru
      _
    // Predicated region
    $region22: #{tpu_custom_call.1} parent=1 // pred_check
      _
    $region23: #{tpu_custom_call.1} parent=1 // pred_check_branch
      %56 = sbr.rel (0) target = $region25
    $region24: #{tpu_custom_call.1} parent=1 // pred_region
      _
    $region25: #{tpu_custom_call.1} parent=1 // pred_fallthru
      _
    // Predicated region
    $region26: #{tpu_custom_call.1} parent=1 // pred_check
      _
    $region27: #{tpu_custom_call.1} parent=1 // pred_check_branch
      %58 = sbr.rel (0) target = $region29
    $region28: #{tpu_custom_call.1} parent=1 // pred_region
      _
    $region29: #{tpu_custom_call.1} parent=1 // pred_fallthru
      _
    // Predicated region
    $region30: #{tpu_custom_call.1} parent=1 // pred_check
      _
    $region31: #{tpu_custom_call.1} parent=1 // pred_check_branch
      %60 = sbr.rel (0) target = $region33
    $region32: #{tpu_custom_call.1} parent=1 // pred_region
      %61 = dma.done [#allocation3], 1024
    $region33: #{tpu_custom_call.1} parent=1 // pred_fallthru
      _
    // Predicated region
    $region34: #{tpu_custom_call.1} parent=1 // pred_check
      _
    $region35: #{tpu_custom_call.1} parent=1 // pred_check_branch
      %63 = sbr.rel (0) target = $region37
    $region36: #{tpu_custom_call.1} parent=1 // pred_region
      %64 = dma.done [#allocation6], 1024
    $region37: #{tpu_custom_call.1} parent=1 // pred_fallthru
      _
    // Predicated region
    $region38: #{tpu_custom_call.1} parent=1 // pred_check
      _
    $region39: #{tpu_custom_call.1} parent=1 // pred_check_branch
      %66 = sbr.rel (0) target = $region41
    $region40: #{tpu_custom_call.1} parent=1 // pred_region
      %67 = dma.done [#allocation6], 1024
    $region41: #{tpu_custom_call.1} parent=1 // pred_fallthru
      _
    %v69 = vld [vmem:[#allocation2] sm:$0xff]
    %v70 = vld [vmem:[#allocation2 + $0x8] sm:$0xff]
    %v71 = vld [vmem:[#allocation2 + $0x10] sm:$0xff]
    %v72 = vld [vmem:[#allocation2 + $0x18] sm:$0xff]
    %v73 = vld [vmem:[#allocation2 + $0x20] sm:$0xff]
    %v74 = vld [vmem:[#allocation2 + $0x28] sm:$0xff]
    %v75 = vld [vmem:[#allocation2 + $0x30] sm:$0xff]
    %v76 = vld [vmem:[#allocation2 + $0x38] sm:$0xff]
    %v77 = vpack.c.bf16 %v70, %v69
    %v78 = vpack.c.bf16 %v72, %v71
    %v79 = vpack.c.bf16 %v74, %v73
    %v80 = vpack.c.bf16 %v76, %v75
    %v81 = vld [vmem:[#allocation5] sm:$0xf]
    %v82 = vld [vmem:[#allocation5 + $0x4] sm:$0xf]
    %v83 = vld [vmem:[#allocation5 + $0x8] sm:$0xf]
    %v84 = vld [vmem:[#allocation5 + $0xc] sm:$0xf]
    %v85 = vld [vmem:[#allocation5 + $0x10] sm:$0xf]
    %v86 = vld [vmem:[#allocation5 + $0x14] sm:$0xf]
    %v87 = vld [vmem:[#allocation5 + $0x18] sm:$0xf]
    %v88 = vld [vmem:[#allocation5 + $0x1c] sm:$0xf]
    %v89 = vld [vmem:[#allocation5 + $0x20] sm:$0xf]
    %v90 = vld [vmem:[#allocation5 + $0x24] sm:$0xf]
    %v91 = vld [vmem:[#allocation5 + $0x28] sm:$0xf]
    %v92 = vld [vmem:[#allocation5 + $0x2c] sm:$0xf]
    %v93 = vld [vmem:[#allocation5 + $0x30] sm:$0xf]
    %v94 = vld [vmem:[#allocation5 + $0x34] sm:$0xf]
    %v95 = vld [vmem:[#allocation5 + $0x38] sm:$0xf]
    %v96 = vld [vmem:[#allocation5 + $0x3c] sm:$0xf]
    %v113 = vunpack.c.l.b16 %v81
    %v114 = vunpack.c.l.b16 %v82
    %v115 = vunpack.c.l.b16 %v83
    %v116 = vunpack.c.l.b16 %v84
    %v117 = vunpack.c.l.b16 %v85
    %v118 = vunpack.c.l.b16 %v86
    %v119 = vunpack.c.l.b16 %v87
    %v120 = vunpack.c.l.b16 %v88
    %v121 = vunpack.c.l.b16 %v89
    %v122 = vunpack.c.l.b16 %v90
    %v123 = vunpack.c.l.b16 %v91
    %v124 = vunpack.c.l.b16 %v92
    %v125 = vunpack.c.l.b16 %v93
    %v126 = vunpack.c.l.b16 %v94
    %v127 = vunpack.c.l.b16 %v95
    %v128 = vunpack.c.l.b16 %v96
    %v129 = vpack.c.b16 %v114, %v113
    %v130 = vpack.c.b16 %v116, %v115
    %v131 = vpack.c.b16 %v118, %v117
    %v132 = vpack.c.b16 %v120, %v119
    %v133 = vpack.c.b16 %v122, %v121
    %v134 = vpack.c.b16 %v124, %v123
    %v135 = vpack.c.b16 %v126, %v125
    %v136 = vpack.c.b16 %v128, %v127
    %145 = vmatprep.subr.bf16.mxu0 0
    %146 = vmatpush1.bf16.msra.mxu0 %v129
    %147 = vmatprep.subr.bf16.mxu0 0
    %148 = vmatpush1.bf16.msra.mxu0 %v130
    %149 = vmatprep.subr.bf16.mxu0 0
    %150 = vmatpush1.bf16.msra.mxu0 %v131
    %151 = vmatprep.subr.bf16.mxu0 0
    %152 = vmatpush1.bf16.msra.mxu0 %v132
    %153 = vmatprep.subr.bf16.mxu0 0
    %154 = vmatpush1.bf16.msra.mxu0 %v133
    %155 = vmatprep.subr.bf16.mxu0 0
    %156 = vmatpush1.bf16.msra.mxu0 %v134
    %157 = vmatprep.subr.bf16.mxu0 0
    %158 = vmatpush1.bf16.msra.mxu0 %v135
    %159 = vmatprep.subr.bf16.mxu0 0
    %160 = vmatpush1.bf16.msra.mxu0 %v136
    %161 = vmatprep.subr.bf16.mxu0 0
    %162 = vmatpush1.bf16.msra.mxu0 0
    %163 = vmatprep.subr.bf16.mxu0 0
    %164 = vmatpush1.bf16.msra.mxu0 0
    %165 = vmatprep.subr.bf16.mxu0 0
    %166 = vmatpush1.bf16.msra.mxu0 0
    %167 = vmatprep.subr.bf16.mxu0 0
    %168 = vmatpush1.bf16.msra.mxu0 0
    %169 = vmatprep.subr.bf16.mxu0 0
    %170 = vmatpush1.bf16.msra.mxu0 0
    %171 = vmatprep.subr.bf16.mxu0 0
    %172 = vmatpush1.bf16.msra.mxu0 0
    %173 = vmatprep.subr.bf16.mxu0 0
    %174 = vmatpush1.bf16.msra.mxu0 0
    %175 = vmatprep.subr.bf16.mxu0 0
    %176 = vmatpush1.bf16.msra.mxu0 0
    %177 = vmatprep.mubr.bf16.mxu0 0
    %178 = vmatmul.mubr.bf16.gmra.mrb[0].mxu0 %v77
    %v179 = vpop.f32.mrb[0].mxu0
    %v180 = vadd.f32 0.0, %v179
    %v181 = vpop.f32.mrb[0].mxu0
    %v182 = vpop.f32.mrb[0].mxu0
    %v183 = vadd.f32 0.0, %v182
    %v184 = vpop.f32.mrb[0].mxu0
    %185 = vmatprep.mubr.bf16.mxu0 0
    %186 = vmatmul.mubr.bf16.gmra.mrb[0].mxu0 %v78
    %v187 = vpop.f32.mrb[0].mxu0
    %v188 = vadd.f32 0.0, %v187
    %v189 = vpop.f32.mrb[0].mxu0
    %v190 = vpop.f32.mrb[0].mxu0
    %v191 = vadd.f32 0.0, %v190
    %v192 = vpop.f32.mrb[0].mxu0
    %193 = vmatprep.mubr.bf16.mxu0 0
    %194 = vmatmul.mubr.bf16.gmra.mrb[0].mxu0 %v79
    %v195 = vpop.f32.mrb[0].mxu0
    %v196 = vadd.f32 0.0, %v195
    %v197 = vpop.f32.mrb[0].mxu0
    %v198 = vpop.f32.mrb[0].mxu0
    %v199 = vadd.f32 0.0, %v198
    %v200 = vpop.f32.mrb[0].mxu0
    %201 = vmatprep.mubr.bf16.mxu0 0
    %202 = vmatmul.mubr.bf16.gmra.mrb[0].mxu0 %v80
    %v203 = vpop.f32.mrb[0].mxu0
    %v204 = vadd.f32 0.0, %v203
    %v205 = vpop.f32.mrb[0].mxu0
    %v206 = vpop.f32.mrb[0].mxu0
    %v207 = vadd.f32 0.0, %v206
    %v208 = vpop.f32.mrb[0].mxu0
    %209 = vdwg.mxu0
    %v210 = vadd.f32 %v180, %v183
    %v211 = vadd.f32 %v210, %v188
    %v212 = vadd.f32 %v211, %v191
    %v213 = vadd.f32 %v212, %v196
    %v214 = vadd.f32 %v213, %v199
    %v215 = vadd.f32 %v214, %v204
    %v216 = vadd.f32 %v215, %v207
    %v217 = vrot.slane %v216, 4
    %v218 = vadd.f32 %v216, %v217
    %v219 = vrot.slane %v218, 2
    %v220 = vadd.f32 %v218, %v219
    %v221 = vrot.slane %v220, 1
    %v222 = vadd.f32 %v220, %v221
    %v223 = vmul.f32 %v180, %v180
    %v224 = vmul.f32 %v183, %v183
    %v225 = vmul.f32 %v188, %v188
    %v226 = vmul.f32 %v191, %v191
    %v227 = vmul.f32 %v196, %v196
    %v228 = vmul.f32 %v199, %v199
    %v229 = vmul.f32 %v204, %v204
    %v230 = vmul.f32 %v207, %v207
    %v231 = vadd.f32 %v223, %v224
    %v232 = vadd.f32 %v231, %v225
    %v233 = vadd.f32 %v232, %v226
    %v234 = vadd.f32 %v233, %v227
    %v235 = vadd.f32 %v234, %v228
    %v236 = vadd.f32 %v235, %v229
    %v237 = vadd.f32 %v236, %v230
    %v238 = vrot.slane %v237, 4
    %v239 = vadd.f32 %v237, %v238
    %v240 = vrot.slane %v239, 2
    %v241 = vadd.f32 %v239, %v240
    %v242 = vrot.slane %v241, 1
    %v243 = vadd.f32 %v241, %v242
    %v244 = vld [vmem:[%s3] sm:$0x1]
    %v245 = vld [vmem:[%s4] sm:$0x1]
    %v246 = vmul.f32 %v222, 0.015625
    %v247 = vmul.f32 %v243, 0.015625
    %v248 = vmul.f32 %v246, %v246
    %v249 = vsub.f32 %v247, %v248
    %v250 = vmax.f32 %v249, 0.0
    %v251 = vadd.f32 %v250, 1e-05
    %v252 = vrsqrt.pop %v251
    %v253 = vmul.f32 %v244, %v252
    %v254 = vmul.f32 %v246, %v253
    %v255 = vsub.f32 %v245, %v254
    %v257 = vlaneseq
    %v258 = vshrl.u32 %v257, 7
    %v259 = vsub.s32 0, %v258
    %v260 = vrot.slane %v253, %v259
    %v262 = vmul.f32 %v180, %v260
    %v263 = vmul.f32 %v183, %v260
    %v264 = vmul.f32 %v188, %v260
    %v265 = vmul.f32 %v191, %v260
    %v266 = vmul.f32 %v196, %v260
    %v267 = vmul.f32 %v199, %v260
    %v268 = vmul.f32 %v204, %v260
    %v269 = vmul.f32 %v207, %v260
    %v271 = vlaneseq
    %v272 = vshrl.u32 %v271, 7
    %v273 = vsub.s32 0, %v272
    %v274 = vrot.slane %v255, %v273
    %v276 = vadd.f32 %v262, %v274
    %v277 = vadd.f32 %v263, %v274
    %v278 = vadd.f32 %v264, %v274
    %v279 = vadd.f32 %v265, %v274
    %v280 = vadd.f32 %v266, %v274
    %v281 = vadd.f32 %v267, %v274
    %v282 = vadd.f32 %v268, %v274
    %v283 = vadd.f32 %v269, %v274
    %v284 = vmax.f32 %v276, 0.0
    %v285 = vmax.f32 %v277, 0.0
    %v286 = vmax.f32 %v278, 0.0
    %v287 = vmax.f32 %v279, 0.0
    %v288 = vmax.f32 %v280, 0.0
    %v289 = vmax.f32 %v281, 0.0
    %v290 = vmax.f32 %v282, 0.0
    %v291 = vmax.f32 %v283, 0.0
    %v292 = vpack.c.bf16 %v285, %v284
    %v293 = vpack.c.bf16 %v287, %v286
    %v294 = vpack.c.bf16 %v289, %v288
    %v295 = vpack.c.bf16 %v291, %v290
    %v296 = vld [vmem:[#allocation7] sm:$0xf]
    %v297 = vld [vmem:[#allocation7 + $0x4] sm:$0xf]
    %v298 = vld [vmem:[#allocation7 + $0x8] sm:$0xf]
    %v299 = vld [vmem:[#allocation7 + $0xc] sm:$0xf]
    %v300 = vld [vmem:[#allocation7 + $0x10] sm:$0xf]
    %v301 = vld [vmem:[#allocation7 + $0x14] sm:$0xf]
    %v302 = vld [vmem:[#allocation7 + $0x18] sm:$0xf]
    %v303 = vld [vmem:[#allocation7 + $0x1c] sm:$0xf]
    %v304 = vld [vmem:[#allocation7 + $0x20] sm:$0xf]
    %v305 = vld [vmem:[#allocation7 + $0x24] sm:$0xf]
    %v306 = vld [vmem:[#allocation7 + $0x28] sm:$0xf]
    %v307 = vld [vmem:[#allocation7 + $0x2c] sm:$0xf]
    %v308 = vld [vmem:[#allocation7 + $0x30] sm:$0xf]
    %v309 = vld [vmem:[#allocation7 + $0x34] sm:$0xf]
    %v310 = vld [vmem:[#allocation7 + $0x38] sm:$0xf]
    %v311 = vld [vmem:[#allocation7 + $0x3c] sm:$0xf]
    %v328 = vunpack.c.l.b16 %v296
    %v329 = vunpack.c.l.b16 %v297
    %v330 = vunpack.c.l.b16 %v298
    %v331 = vunpack.c.l.b16 %v299
    %v332 = vunpack.c.l.b16 %v300
    %v333 = vunpack.c.l.b16 %v301
    %v334 = vunpack.c.l.b16 %v302
    %v335 = vunpack.c.l.b16 %v303
    %v336 = vunpack.c.l.b16 %v304
    %v337 = vunpack.c.l.b16 %v305
    %v338 = vunpack.c.l.b16 %v306
    %v339 = vunpack.c.l.b16 %v307
    %v340 = vunpack.c.l.b16 %v308
    %v341 = vunpack.c.l.b16 %v309
    %v342 = vunpack.c.l.b16 %v310
    %v343 = vunpack.c.l.b16 %v311
    %v344 = vpack.c.b16 %v329, %v328
    %v345 = vpack.c.b16 %v331, %v330
    %v346 = vpack.c.b16 %v333, %v332
    %v347 = vpack.c.b16 %v335, %v334
    %v348 = vpack.c.b16 %v337, %v336
    %v349 = vpack.c.b16 %v339, %v338
    %v350 = vpack.c.b16 %v341, %v340
    %v351 = vpack.c.b16 %v343, %v342
    %360 = vmatprep.subr.bf16.mxu0 0
    %361 = vmatpush1.bf16.msra.mxu0 %v344
    %362 = vmatprep.subr.bf16.mxu0 0
    %363 = vmatpush1.bf16.msra.mxu0 %v345
    %364 = vmatprep.subr.bf16.mxu0 0
    %365 = vmatpush1.bf16.msra.mxu0 %v346
    %366 = vmatprep.subr.bf16.mxu0 0
    %367 = vmatpush1.bf16.msra.mxu0 %v347
    %368 = vmatprep.subr.bf16.mxu0 0
    %369 = vmatpush1.bf16.msra.mxu0 %v348
    %370 = vmatprep.subr.bf16.mxu0 0
    %371 = vmatpush1.bf16.msra.mxu0 %v349
    %372 = vmatprep.subr.bf16.mxu0 0
    %373 = vmatpush1.bf16.msra.mxu0 %v350
    %374 = vmatprep.subr.bf16.mxu0 0
    %375 = vmatpush1.bf16.msra.mxu0 %v351
    %376 = vmatprep.subr.bf16.mxu0 0
    %377 = vmatpush1.bf16.msra.mxu0 0
    %378 = vmatprep.subr.bf16.mxu0 0
    %379 = vmatpush1.bf16.msra.mxu0 0
    %380 = vmatprep.subr.bf16.mxu0 0
    %381 = vmatpush1.bf16.msra.mxu0 0
    %382 = vmatprep.subr.bf16.mxu0 0
    %383 = vmatpush1.bf16.msra.mxu0 0
    %384 = vmatprep.subr.bf16.mxu0 0
    %385 = vmatpush1.bf16.msra.mxu0 0
    %386 = vmatprep.subr.bf16.mxu0 0
    %387 = vmatpush1.bf16.msra.mxu0 0
    %388 = vmatprep.subr.bf16.mxu0 0
    %389 = vmatpush1.bf16.msra.mxu0 0
    %390 = vmatprep.subr.bf16.mxu0 0
    %391 = vmatpush1.bf16.msra.mxu0 0
    %392 = vmatprep.mubr.bf16.mxu0 0
    %393 = vmatmul.mubr.bf16.gmra.mrb[0].mxu0 %v292
    %v394 = vpop.f32.mrb[0].mxu0
    %v395 = vadd.f32 0.0, %v394
    %v396 = vpop.f32.mrb[0].mxu0
    %v397 = vpop.f32.mrb[0].mxu0
    %v398 = vadd.f32 0.0, %v397
    %v399 = vpop.f32.mrb[0].mxu0
    %400 = vmatprep.mubr.bf16.mxu0 0
    %401 = vmatmul.mubr.bf16.gmra.mrb[0].mxu0 %v293
    %v402 = vpop.f32.mrb[0].mxu0
    %v403 = vadd.f32 0.0, %v402
    %v404 = vpop.f32.mrb[0].mxu0
    %v405 = vpop.f32.mrb[0].mxu0
    %v406 = vadd.f32 0.0, %v405
    %v407 = vpop.f32.mrb[0].mxu0
    %408 = vmatprep.mubr.bf16.mxu0 0
    %409 = vmatmul.mubr.bf16.gmra.mrb[0].mxu0 %v294
    %v410 = vpop.f32.mrb[0].mxu0
    %v411 = vadd.f32 0.0, %v410
    %v412 = vpop.f32.mrb[0].mxu0
    %v413 = vpop.f32.mrb[0].mxu0
    %v414 = vadd.f32 0.0, %v413
    %v415 = vpop.f32.mrb[0].mxu0
    %416 = vmatprep.mubr.bf16.mxu0 0
    %417 = vmatmul.mubr.bf16.gmra.mrb[0].mxu0 %v295
    %v418 = vpop.f32.mrb[0].mxu0
    %v419 = vadd.f32 0.0, %v418
    %v420 = vpop.f32.mrb[0].mxu0
    %v421 = vpop.f32.mrb[0].mxu0
    %v422 = vadd.f32 0.0, %v421
    %v423 = vpop.f32.mrb[0].mxu0
    %424 = vdwg.mxu0
    %v425 = vadd.f32 %v395, %v398
    %v426 = vadd.f32 %v425, %v403
    %v427 = vadd.f32 %v426, %v406
    %v428 = vadd.f32 %v427, %v411
    %v429 = vadd.f32 %v428, %v414
    %v430 = vadd.f32 %v429, %v419
    %v431 = vadd.f32 %v430, %v422
    %v432 = vrot.slane %v431, 4
    %v433 = vadd.f32 %v431, %v432
    %v434 = vrot.slane %v433, 2
    %v435 = vadd.f32 %v433, %v434
    %v436 = vrot.slane %v435, 1
    %v437 = vadd.f32 %v435, %v436
    %v438 = vmul.f32 %v395, %v395
    %v439 = vmul.f32 %v398, %v398
    %v440 = vmul.f32 %v403, %v403
    %v441 = vmul.f32 %v406, %v406
    %v442 = vmul.f32 %v411, %v411
    %v443 = vmul.f32 %v414, %v414
    %v444 = vmul.f32 %v419, %v419
    %v445 = vmul.f32 %v422, %v422
    %v446 = vadd.f32 %v438, %v439
    %v447 = vadd.f32 %v446, %v440
    %v448 = vadd.f32 %v447, %v441
    %v449 = vadd.f32 %v448, %v442
    %v450 = vadd.f32 %v449, %v443
    %v451 = vadd.f32 %v450, %v444
    %v452 = vadd.f32 %v451, %v445
    %v453 = vrot.slane %v452, 4
    %v454 = vadd.f32 %v452, %v453
    %v455 = vrot.slane %v454, 2
    %v456 = vadd.f32 %v454, %v455
    %v457 = vrot.slane %v456, 1
    %v458 = vadd.f32 %v456, %v457
    %v459 = vld [vmem:[%s5] sm:$0x1]
    %v460 = vld [vmem:[%s6] sm:$0x1]
    %v461 = vmul.f32 %v437, 0.015625
    %v462 = vmul.f32 %v458, 0.015625
    %v463 = vmul.f32 %v461, %v461
    %v464 = vsub.f32 %v462, %v463
    %v465 = vmax.f32 %v464, 0.0
    %v466 = vadd.f32 %v465, 1e-05
    %v467 = vrsqrt.pop %v466
    %v468 = vmul.f32 %v459, %v467
    %v469 = vmul.f32 %v461, %v468
    %v470 = vsub.f32 %v460, %v469
    %v472 = vlaneseq
    %v473 = vshrl.u32 %v472, 7
    %v474 = vsub.s32 0, %v473
    %v475 = vrot.slane %v468, %v474
    %v477 = vmul.f32 %v395, %v475
    %v478 = vmul.f32 %v398, %v475
    %v479 = vmul.f32 %v403, %v475
    %v480 = vmul.f32 %v406, %v475
    %v481 = vmul.f32 %v411, %v475
    %v482 = vmul.f32 %v414, %v475
    %v483 = vmul.f32 %v419, %v475
    %v484 = vmul.f32 %v422, %v475
    %v486 = vlaneseq
    %v487 = vshrl.u32 %v486, 7
    %v488 = vsub.s32 0, %v487
    %v489 = vrot.slane %v470, %v488
    %v491 = vadd.f32 %v477, %v489
    %v492 = vadd.f32 %v478, %v489
    %v493 = vadd.f32 %v479, %v489
    %v494 = vadd.f32 %v480, %v489
    %v495 = vadd.f32 %v481, %v489
    %v496 = vadd.f32 %v482, %v489
    %v497 = vadd.f32 %v483, %v489
    %v498 = vadd.f32 %v484, %v489
    %v499 = vadd.f32 %v491, %v69
    %v500 = vadd.f32 %v492, %v70
    %v501 = vadd.f32 %v493, %v71
    %v502 = vadd.f32 %v494, %v72
    %v503 = vadd.f32 %v495, %v73
    %v504 = vadd.f32 %v496, %v74
    %v505 = vadd.f32 %v497, %v75
    %v506 = vadd.f32 %v498, %v76
    %v507 = vmax.f32 %v499, 0.0
    %v508 = vmax.f32 %v500, 0.0
    %v509 = vmax.f32 %v501, 0.0
    %v510 = vmax.f32 %v502, 0.0
    %v511 = vmax.f32 %v503, 0.0
    %v512 = vmax.f32 %v504, 0.0
    %v513 = vmax.f32 %v505, 0.0
    %v514 = vmax.f32 %v506, 0.0
    %515 = vst [vmem:[#allocation8] sm:$0xff] %v507
    %516 = vst [vmem:[#allocation8 + $0x8] sm:$0xff] %v508
    %517 = vst [vmem:[#allocation8 + $0x10] sm:$0xff] %v509
    %518 = vst [vmem:[#allocation8 + $0x18] sm:$0xff] %v510
    %519 = vst [vmem:[#allocation8 + $0x20] sm:$0xff] %v511
    %520 = vst [vmem:[#allocation8 + $0x28] sm:$0xff] %v512
    %521 = vst [vmem:[#allocation8 + $0x30] sm:$0xff] %v513
    %522 = vst [vmem:[#allocation8 + $0x38] sm:$0xff] %v514
    // Predicated region
    $region42: #{tpu_custom_call.1} parent=1 // pred_check
      _
    $region43: #{tpu_custom_call.1} parent=1 // pred_check_branch
      %524 = sbr.rel (0) target = $region45
    $region44: #{tpu_custom_call.1} parent=1 // pred_region
      %s526 = ssub.s32 1024, 1024
      %527 = vsyncadd [#allocation4], %s526
      %s528 = sshll.u32 [#allocation8], 4
      %s529 = int_to_ptr.vmem [resolvable:$true] %s528
      %534 = dma.vmem_to_hbm [thread:$0]  %s529, 1024, %s7, [#allocation4], 128, 128, 8
    $region45: #{tpu_custom_call.1} parent=1 // pred_fallthru
      _
    // Predicated region
    $region46: #{tpu_custom_call.1} parent=1 // pred_check
      _
    $region47: #{tpu_custom_call.1} parent=1 // pred_check_branch
      %536 = sbr.rel (0) target = $region49
    $region48: #{tpu_custom_call.1} parent=1 // pred_region
      %537 = dma.done [#allocation4], 1024
    $region49: #{tpu_custom_call.1} parent=1 // pred_fallthru
      _
    %538 = vsyncpa [#allocation3], 1
    %539 = vsyncpa [#allocation6], 1
    %540 = vsyncpa [#allocation4], 1

</llo_original>
